<compile_context>
chip_gen: v7x
topology: tpu7x:2x2x1
jax: 0.10.0
libtpu: 0.0.40
codegen_flags: <defaults>
</compile_context>

<pallas_src>
import functools

import jax
import jax.numpy as jnp
from jax import lax
from jax.experimental import pallas as pl
from jax.experimental.pallas import tpu as pltpu


def conv3x3_im2col_kernel(x_ref, w_ref, b_ref, o_ref, *, W):
    # x_ref: (1, Cin, H*W)   -- one batch element, spatial flattened onto lanes
    # w_ref: (Cout, 9*Cin)   -- column index = (dh*3 + dw)*Cin + ci
    # b_ref: (Cout, 1)
    # o_ref: (1, Cout, H*W)  -- conv output in NCHW order, lane-dense
    Cin = x_ref.shape[1]
    HW = x_ref.shape[2]
    x = x_ref[0]                                    # (Cin, H*W)

    # Fold the 1-pixel zero halo into the flattened spatial axis: one zero row
    # (+1 element) on each side, so every 3x3 tap becomes a contiguous
    # length-HW lane slice of this buffer (no HBM-side jnp.pad).
    zpad = jnp.zeros((Cin, W + 1), dtype=x.dtype)
    xf = jnp.concatenate([zpad, x, zpad], axis=1)   # (Cin, HW + 2*W + 2)

    # Lane masks for the left/right image borders (w == 0 / w == W-1), where a
    # horizontally shifted tap would otherwise wrap into the neighbouring row.
    col = lax.broadcasted_iota(jnp.int32, (1, HW), 1) % W
    left_ok = col != 0           # valid lanes for dw == 0 taps
    right_ok = col != (W - 1)    # valid lanes for dw == 2 taps

    # im2col: 9 shifted views stacked along the contraction axis.
    taps = []
    for dh in range(3):
        for dw in range(3):
            s = dh * W + dw
            sl = xf[:, s:s + HW]                    # (Cin, HW) contiguous slice
            if dw == 0:
                sl = jnp.where(left_ok, sl, 0.0)
            elif dw == 2:
                sl = jnp.where(right_ok, sl, 0.0)
            taps.append(sl)
    x_col = jnp.concatenate(taps, axis=0)           # (9*Cin, HW)

    # One MXU matmul: (Cout, 9*Cin) @ (9*Cin, HW) -> (Cout, HW), f32 accumulate.
    acc = jnp.dot(w_ref[...], x_col, preferred_element_type=jnp.float32)
    acc = acc + b_ref[...]                          # bias broadcast over lanes
    o_ref[0] = acc.astype(o_ref.dtype)


def upsample_block(x_nchw, weight, bias, upscale_factor):
    """Conv2d(C, C*r*r, 3, stride=1, pad=1) + PixelShuffle(r). x: (N, C, H, W)."""
    N, C, H, W = x_nchw.shape
    r = upscale_factor
    Cout = C * r * r
    HW = H * W

    # Free (contiguous) reshape: spatial goes onto the lane axis — no transpose,
    # no padding, no extra HBM round trip for the activation.
    x_flat = x_nchw.reshape(N, C, HW)
    # PyTorch weight (Cout, Cin, 3, 3) -> (Cout, 9*Cin), col = (dh*3+dw)*Cin + ci.
    w_mat = jnp.transpose(weight, (0, 2, 3, 1)).reshape(Cout, 9 * C)
    b_col = bias.reshape(Cout, 1)

    # TODO(synk): for large resolutions (H >= ~256), add an H-row grid axis with
    # a 1-row halo so VMEM use stays resolution-independent (needed on v7x 64MiB).
    conv = pl.pallas_call(
        functools.partial(conv3x3_im2col_kernel, W=W),
        out_shape=jax.ShapeDtypeStruct((N, Cout, HW), x_nchw.dtype),
        grid=(N,),
        in_specs=[
            pl.BlockSpec((1, C, HW), lambda n: (n, 0, 0)),
            pl.BlockSpec((Cout, 9 * C), lambda n: (0, 0)),
            pl.BlockSpec((Cout, 1), lambda n: (0, 0)),
        ],
        out_specs=pl.BlockSpec((1, Cout, HW), lambda n: (n, 0, 0)),
        compiler_params=pltpu.CompilerParams(
            dimension_semantics=("parallel",)),
    )(x_flat, w_mat, b_col)

    # PixelShuffle: conv is already NCHW-ordered, so only this one small output
    # transpose remains; the surrounding reshapes are free (contiguous).
    y = conv.reshape(N, C, r, r, H, W)
    y = jnp.transpose(y, (0, 1, 4, 2, 5, 3))        # (N, C, H, r, W, r)
    return y.reshape(N, C, H * r, W * r)


def _reference(x_nchw, weight, bias, r):
    # Pure-JAX reference: lax conv (NCHW) + pixel shuffle.
    y = lax.conv_general_dilated(
        x_nchw, weight, window_strides=(1, 1), padding=((1, 1), (1, 1)),
        dimension_numbers=("NCHW", "OIHW", "NCHW"))
    y = y + bias[None, :, None, None]
    N, Co, H, W = y.shape
    C = Co // (r * r)
    y = y.reshape(N, C, r, r, H, W)
    y = jnp.transpose(y, (0, 1, 4, 2, 5, 3))
    return y.reshape(N, C, H * r, W * r)


if __name__ == "__main__":
    # Module config: channels=4, upscale_factor=2.
    channels = 4
    upscale = 2
    N, H, W = 2, 16, 16
    Cout = channels * upscale * upscale

    key = jax.random.PRNGKey(0)
    kx, kw, kb = jax.random.split(key, 3)
    x = jax.random.normal(kx, (N, channels, H, W), dtype=jnp.float32)
    # Deterministic synthetic parameters (Conv2d weight/bias shapes from __init__).
    weight = jax.random.normal(kw, (Cout, channels, 3, 3), dtype=jnp.float32) * 0.1
    bias = jax.random.normal(kb, (Cout,), dtype=jnp.float32) * 0.1

    out = upsample_block(x, weight, bias, upscale)
    out = jax.block_until_ready(out)

    ref = _reference(x, weight, bias, upscale)
    assert out.shape == (N, channels, H * upscale, W * upscale), out.shape
    assert jnp.allclose(out, ref, atol=1e-4, rtol=1e-4), "mismatch vs reference"

    print("KERNEL_OK")
</pallas_src>

<mosaic_0001>
module attributes {stable_mosaic.version = 11 : i64} {
  func.func @conv3x3_im2col_kernel(%arg0: i32, %arg1: memref<1x4x256xf32, #tpu.memory_space<vmem>>, %arg2: memref<16x36xf32, #tpu.memory_space<vmem>>, %arg3: memref<16x1xf32, #tpu.memory_space<vmem>>, %arg4: memref<1x16x256xf32, #tpu.memory_space<vmem>>) attributes {dimension_semantics = [#tpu.dimension_semantics<parallel>], iteration_bounds = array<i64: 2>, scalar_prefetch = 0 : i64, scratch_operands = 0 : i64, tpu.core_type = #tpu.core_type<tc>, window_params = [{transform_indices = @transform_0, window_bounds = array<i64: 1, 4, 256>}, {pipeline_mode = #tpu.pipeline_mode<synchronous>, transform_indices = @transform_1, window_bounds = array<i64: 16, 36>}, {pipeline_mode = #tpu.pipeline_mode<synchronous>, transform_indices = @transform_2, window_bounds = array<i64: 16, 1>}, {transform_indices = @transform_3, window_bounds = array<i64: 1, 16, 256>}]} {
    %c0 = arith.constant 0 : index
    %c0_0 = arith.constant 0 : index
    %c0_1 = arith.constant 0 : index
    %0 = vector.load %arg1[%c0, %c0_0, %c0_1] : memref<1x4x256xf32, #tpu.memory_space<vmem>>, vector<1x4x256xf32>
    %1 = vector.shape_cast %0 : vector<1x4x256xf32> to vector<4x256xf32>
    %cst = arith.constant 0.000000e+00 : f32
    %2 = vector.broadcast %cst : f32 to vector<4x17xf32>
    %3 = tpu.concatenate %2, %1, %2 in 1 : vector<4x17xf32>, vector<4x256xf32>, vector<4x17xf32> -> vector<4x290xf32>
    %4 = tpu.iota {dimensions = array<i32: 1>} : vector<1x256xi32>
    %c16_i32 = arith.constant 16 : i32
    %c0_i32 = arith.constant 0 : i32
    %5 = arith.cmpi eq, %c16_i32, %c0_i32 : i32
    %c1_i32 = arith.constant 1 : i32
    %6 = arith.select %5, %c1_i32, %c16_i32 : i32
    %7 = vector.broadcast %6 : i32 to vector<1x256xi32>
    %8 = arith.remsi %4, %7 : vector<1x256xi32>
    %c0_i32_2 = arith.constant 0 : i32
    %9 = vector.broadcast %c0_i32_2 : i32 to vector<1x256xi32>
    %10 = arith.cmpi ne, %8, %9 : vector<1x256xi32>
    %c0_i32_3 = arith.constant 0 : i32
    %11 = vector.broadcast %c0_i32_3 : i32 to vector<1x256xi32>
    %12 = arith.cmpi slt, %8, %11 : vector<1x256xi32>
    %c0_i32_4 = arith.constant 0 : i32
    %13 = arith.cmpi slt, %6, %c0_i32_4 : i32
    %14 = vector.broadcast %13 : i1 to vector<1x256xi1>
    %15 = vector.broadcast %14 : vector<1x256xi1> to vector<1x256xi1>
    %16 = arith.xori %12, %15 : vector<1x256xi1>
    %17 = arith.andi %16, %10 : vector<1x256xi1>
    %18 = vector.broadcast %6 : i32 to vector<1x256xi32>
    %19 = arith.addi %8, %18 : vector<1x256xi32>
    %20 = arith.select %17, %19, %8 : vector<1x256xi1>, vector<1x256xi32>
    %c0_i32_5 = arith.constant 0 : i32
    %21 = vector.broadcast %c0_i32_5 : i32 to vector<1x256xi32>
    %22 = arith.cmpi ne, %20, %21 : vector<1x256xi32>
    %c15_i32 = arith.constant 15 : i32
    %23 = vector.broadcast %c15_i32 : i32 to vector<1x256xi32>
    %24 = arith.cmpi ne, %20, %23 : vector<1x256xi32>
    %25 = vector.extract_strided_slice %3 {offsets = [0, 0], sizes = [4, 256], strides = [1, 1]} : vector<4x290xf32> to vector<4x256xf32>
    %cst_6 = arith.constant 0.000000e+00 : f32
    %26 = vector.shape_cast %22 : vector<1x256xi1> to vector<1x256xi1>
    %27 = vector.broadcast %26 : vector<1x256xi1> to vector<4x256xi1>
    %28 = vector.broadcast %cst_6 : f32 to vector<4x256xf32>
    %29 = arith.select %27, %25, %28 : vector<4x256xi1>, vector<4x256xf32>
    %30 = vector.extract_strided_slice %3 {offsets = [0, 1], sizes = [4, 256], strides = [1, 1]} : vector<4x290xf32> to vector<4x256xf32>
    %31 = vector.extract_strided_slice %3 {offsets = [0, 2], sizes = [4, 256], strides = [1, 1]} : vector<4x290xf32> to vector<4x256xf32>
    %cst_7 = arith.constant 0.000000e+00 : f32
    %32 = vector.shape_cast %24 : vector<1x256xi1> to vector<1x256xi1>
    %33 = vector.broadcast %32 : vector<1x256xi1> to vector<4x256xi1>
    %34 = vector.broadcast %cst_7 : f32 to vector<4x256xf32>
    %35 = arith.select %33, %31, %34 : vector<4x256xi1>, vector<4x256xf32>
    %36 = vector.extract_strided_slice %3 {offsets = [0, 16], sizes = [4, 256], strides = [1, 1]} : vector<4x290xf32> to vector<4x256xf32>
    %cst_8 = arith.constant 0.000000e+00 : f32
    %37 = vector.shape_cast %22 : vector<1x256xi1> to vector<1x256xi1>
    %38 = vector.broadcast %37 : vector<1x256xi1> to vector<4x256xi1>
    %39 = vector.broadcast %cst_8 : f32 to vector<4x256xf32>
    %40 = arith.select %38, %36, %39 : vector<4x256xi1>, vector<4x256xf32>
    %41 = vector.extract_strided_slice %3 {offsets = [0, 17], sizes = [4, 256], strides = [1, 1]} : vector<4x290xf32> to vector<4x256xf32>
    %42 = vector.extract_strided_slice %3 {offsets = [0, 18], sizes = [4, 256], strides = [1, 1]} : vector<4x290xf32> to vector<4x256xf32>
    %cst_9 = arith.constant 0.000000e+00 : f32
    %43 = vector.shape_cast %24 : vector<1x256xi1> to vector<1x256xi1>
    %44 = vector.broadcast %43 : vector<1x256xi1> to vector<4x256xi1>
    %45 = vector.broadcast %cst_9 : f32 to vector<4x256xf32>
    %46 = arith.select %44, %42, %45 : vector<4x256xi1>, vector<4x256xf32>
    %47 = vector.extract_strided_slice %3 {offsets = [0, 32], sizes = [4, 256], strides = [1, 1]} : vector<4x290xf32> to vector<4x256xf32>
    %cst_10 = arith.constant 0.000000e+00 : f32
    %48 = vector.shape_cast %22 : vector<1x256xi1> to vector<1x256xi1>
    %49 = vector.broadcast %48 : vector<1x256xi1> to vector<4x256xi1>
    %50 = vector.broadcast %cst_10 : f32 to vector<4x256xf32>
    %51 = arith.select %49, %47, %50 : vector<4x256xi1>, vector<4x256xf32>
    %52 = vector.extract_strided_slice %3 {offsets = [0, 33], sizes = [4, 256], strides = [1, 1]} : vector<4x290xf32> to vector<4x256xf32>
    %53 = vector.extract_strided_slice %3 {offsets = [0, 34], sizes = [4, 256], strides = [1, 1]} : vector<4x290xf32> to vector<4x256xf32>
    %cst_11 = arith.constant 0.000000e+00 : f32
    %54 = vector.shape_cast %24 : vector<1x256xi1> to vector<1x256xi1>
    %55 = vector.broadcast %54 : vector<1x256xi1> to vector<4x256xi1>
    %56 = vector.broadcast %cst_11 : f32 to vector<4x256xf32>
    %57 = arith.select %55, %53, %56 : vector<4x256xi1>, vector<4x256xf32>
    %58 = tpu.concatenate %29, %30, %35, %40, %41, %46, %51, %52, %57 in 0 : vector<4x256xf32>, vector<4x256xf32>, vector<4x256xf32>, vector<4x256xf32>, vector<4x256xf32>, vector<4x256xf32>, vector<4x256xf32>, vector<4x256xf32>, vector<4x256xf32> -> vector<36x256xf32>
    %c0_12 = arith.constant 0 : index
    %c0_13 = arith.constant 0 : index
    %59 = vector.load %arg2[%c0_12, %c0_13] : memref<16x36xf32, #tpu.memory_space<vmem>>, vector<16x36xf32>
    %cst_14 = arith.constant dense<0.000000e+00> : vector<16x256xf32>
    %60 = tpu.matmul %59, %58, %cst_14 {dimension_numbers = #tpu.dot_dimension_numbers<[1], [0], [0], [1], [0, 0, 1, 1], [], []>} : vector<16x36xf32>, vector<36x256xf32>, vector<16x256xf32> -> vector<16x256xf32>
    %c0_15 = arith.constant 0 : index
    %c0_16 = arith.constant 0 : index
    %61 = vector.load %arg3[%c0_15, %c0_16] : memref<16x1xf32, #tpu.memory_space<vmem>>, vector<16x1xf32>
    %62 = vector.broadcast %61 : vector<16x1xf32> to vector<16x256xf32>
    %63 = arith.addf %60, %62 : vector<16x256xf32>
    %c0_17 = arith.constant 0 : index
    %c0_18 = arith.constant 0 : index
    %c0_19 = arith.constant 0 : index
    %64 = vector.load %arg4[%c0_17, %c0_18, %c0_19] : memref<1x16x256xf32, #tpu.memory_space<vmem>>, vector<1x16x256xf32>
    %65 = vector.shape_cast %64 : vector<1x16x256xf32> to vector<16x256xf32>
    %66 = vector.shape_cast %63 : vector<16x256xf32> to vector<1x16x256xf32>
    tpu.vector_store %arg4[%c0_17, %c0_18, %c0_19], %66 {strides = array<i32>} : memref<1x16x256xf32, #tpu.memory_space<vmem>>, vector<1x16x256xf32>,
    return
  }
  func.func @transform_0(%arg0: i32) -> (i32, i32, i32) {
    %c0_i32 = arith.constant 0 : i32
    %c0_i32_0 = arith.constant 0 : i32
    %c0_i32_1 = arith.constant 0 : i32
    return %arg0, %c0_i32, %c0_i32_0 : i32, i32, i32
  }
  func.func @transform_1(%arg0: i32) -> (i32, i32) {
    %c0_i32 = arith.constant 0 : i32
    %c0_i32_0 = arith.constant 0 : i32
    %c0_i32_1 = arith.constant 0 : i32
    return %c0_i32, %c0_i32_0 : i32, i32
  }
  func.func @transform_2(%arg0: i32) -> (i32, i32) {
    %c0_i32 = arith.constant 0 : i32
    %c0_i32_0 = arith.constant 0 : i32
    %c0_i32_1 = arith.constant 0 : i32
    return %c0_i32, %c0_i32_0 : i32, i32
  }
  func.func @transform_3(%arg0: i32) -> (i32, i32, i32) {
    %c0_i32 = arith.constant 0 : i32
    %c0_i32_0 = arith.constant 0 : i32
    %c0_i32_1 = arith.constant 0 : i32
    return %arg0, %c0_i32, %c0_i32_0 : i32, i32, i32
  }
}

</mosaic_0001>

<llo_original>
// kernel: tpu_custom_call.1
$region0: #{tpu_custom_call.1}
  #allocation0 [shape = 'u32[]', space=smem, size = 0x4, offset = 0x4, fixed_abs, tag = 'smem constant byte address 0x4 - core index']
  #allocation1 [shape = 'u32[144,128]{1,0:T(1,128)}', space=vmem, size = 0x12000, scoped, tag = 'internal scratch']
  %s0 = inlined_call_operand.vmem [shape: f32[2,4,256], index: 0, kind: input, shape index: {}]
  %s1 = inlined_call_operand.hbm [shape: f32[16,36], index: 1, kind: input, shape index: {}]
  %s2 = inlined_call_operand.vmem [shape: f32[16,1], index: 2, kind: input, shape index: {}]
  %s3 = inlined_call_operand.hbm [shape: f32[2,16,256], index: 3, kind: output, shape index: {}]
  %s4 = sld [smem:[#allocation0]]
  $region49: #{tpu_custom_call.1} parent=0
    _
  %s6 = ssub.s32 1, %s4
  %s7 = scalar_select 0, %s6, %s4
  $region1: #{tpu_custom_call.1} parent=0
    #allocation2 [shape = 'u8[8192]{0}', space=vmem, size = 0x2000, scoped, tag = 'input window, operand 1, single buffered']
    #allocation3 [shape = 's32[2]{0}', space=sflag, size = 0x8, scoped, tag = 'scoped memory for tpu_custom_call.1']
    #allocation4 [shape = 's32[2]{0}', space=sflag, size = 0x8, scoped, tag = 'scoped memory for tpu_custom_call.1']
    #allocation5 [shape = 'u8[32768]{0}', space=vmem, size = 0x8000, scoped, tag = 'output window, operand 0']
    %8 = vsyncpa [#allocation3], 0
    %9 = vsyncpa [#allocation4], 0
    %s10 = scalar_lea.sflag [#allocation4], 1
    %11 = vsyncpa %s10, 0
    loop: start=0, step=1, limit=4
    $region2: #{tpu_custom_call.1} parent=1 // loop_pre_header
      _
    $region3: #{tpu_custom_call.1} parent=1 // loop_header
      %s13 = sphi 0, %s17
      %p14 = scmp.ge.s32.totalorder %s13, 4
      %s23 = sphi 0, %s25
      %s26 = sphi 0, %s23
      %s27 = sphi 0, %s26
      %s43 = sphi 0, %s27
      %s47 = sphi 0, %s47
      %s49 = sphi 0, %s47
      %s50 = sphi 0, %s49
      %s64 = sphi 0, %s50
      %s68 = sphi 0, %s68
      %s70 = sphi 0, %s68
      %s71 = sphi 0, %s70
      %s85 = sphi 0, %s71
      %s91 = sphi 0, %s93
      %s94 = sphi 0, %s91
      %s95 = sphi 0, %s94
      %s111 = sphi 0, %s95
    $region4: #{tpu_custom_call.1} parent=1 // loop_header_branch
      %16 = sbr.rel (%p14) target = $region8
    $region5: #{tpu_custom_call.1} parent=1 // loop_body
      %s18 = ssub.s32 %s13, 1
      %s19 = ssub.s32 %s13, 2
      %s20 = sadd.s32 %s13, 1
      %s21 = ssub.s32 %s13, %s20
      %p22 = scmp.eq.s32.totalorder %s21, 0
      %s24 = sadd.s32 %s23, 1
      %s25 = scalar_select %p22, %s23, %s24
      %p28 = pneg %p22
      %p29 = scmp.eq.s32.totalorder %s13, 1
      %p30 = por %p28, %p29
      %p31 = scmp.ne.s32.totalorder %s23, %s26
      %p32 = scmp.eq.s32.totalorder %s13, 0
      %p33 = por %p31, %p32
      %p34 = scmp.ne.s32.totalorder %s23, %s26
      %p35 = scmp.eq.s32.totalorder %s18, 1
      %p36 = por %p34, %p35
      %p37 = scmp.ne.s32.totalorder %s26, %s27
      %p38 = scmp.eq.s32.totalorder %s18, 0
      %p39 = por %p37, %p38
      %p40 = scmp.ne.s32.totalorder %s26, %s27
      %p41 = scmp.eq.s32.totalorder %s19, 1
      %p42 = por %p40, %p41
      %p44 = scmp.ne.s32.totalorder %s27, %s43
      %p45 = scmp.eq.s32.totalorder %s19, 0
      %p46 = por %p44, %p45
      %s48 = sadd.s32 %s47, 1
      %p51 = scmp.eq.s32.totalorder %s13, 1
      %p52 = scmp.ne.s32.totalorder %s47, %s49
      %p53 = scmp.eq.s32.totalorder %s13, 0
      %p54 = por %p52, %p53
      %p55 = scmp.ne.s32.totalorder %s47, %s49
      %p56 = scmp.eq.s32.totalorder %s18, 1
      %p57 = por %p55, %p56
      %p58 = scmp.ne.s32.totalorder %s49, %s50
      %p59 = scmp.eq.s32.totalorder %s18, 0
      %p60 = por %p58, %p59
      %p61 = scmp.ne.s32.totalorder %s49, %s50
      %p62 = scmp.eq.s32.totalorder %s19, 1
      %p63 = por %p61, %p62
      %p65 = scmp.ne.s32.totalorder %s50, %s64
      %p66 = scmp.eq.s32.totalorder %s19, 0
      %p67 = por %p65, %p66
      %s69 = sadd.s32 %s68, 1
      %p72 = scmp.eq.s32.totalorder %s13, 1
      %p73 = scmp.ne.s32.totalorder %s68, %s70
      %p74 = scmp.eq.s32.totalorder %s13, 0
      %p75 = por %p73, %p74
      %p76 = scmp.ne.s32.totalorder %s68, %s70
      %p77 = scmp.eq.s32.totalorder %s18, 1
      %p78 = por %p76, %p77
      %p79 = scmp.ne.s32.totalorder %s70, %s71
      %p80 = scmp.eq.s32.totalorder %s18, 0
      %p81 = por %p79, %p80
      %p82 = scmp.ne.s32.totalorder %s70, %s71
      %p83 = scmp.eq.s32.totalorder %s19, 1
      %p84 = por %p82, %p83
      %p86 = scmp.ne.s32.totalorder %s71, %s85
      %p87 = scmp.eq.s32.totalorder %s19, 0
      %p88 = por %p86, %p87
      %s89 = ssub.s32 %s13, %s20
      %p90 = scmp.eq.s32.totalorder %s89, 0
      %s92 = sadd.s32 %s91, 1
      %s93 = scalar_select %p90, %s91, %s92
      %p96 = pneg %p90
      %p97 = scmp.eq.s32.totalorder %s13, 1
      %p98 = por %p96, %p97
      %p99 = scmp.ne.s32.totalorder %s91, %s94
      %p100 = scmp.eq.s32.totalorder %s13, 0
      %p101 = por %p99, %p100
      %p102 = scmp.ne.s32.totalorder %s91, %s94
      %p103 = scmp.eq.s32.totalorder %s18, 1
      %p104 = por %p102, %p103
      %p105 = scmp.ne.s32.totalorder %s94, %s95
      %p106 = scmp.eq.s32.totalorder %s18, 0
      %p107 = por %p105, %p106
      %p108 = scmp.ne.s32.totalorder %s94, %s95
      %p109 = scmp.eq.s32.totalorder %s19, 1
      %p110 = por %p108, %p109
      %p112 = scmp.ne.s32.totalorder %s95, %s111
      %p113 = scmp.eq.s32.totalorder %s19, 0
      %p114 = por %p112, %p113
      %p115 = scmp.le.s32.totalorder 1, %s13
      %p116 = scmp.lt.s32.totalorder %s13, 3
      %p117 = pnand %p115, %p116
      %p118 = pneg %p117
      // Predicated region
      $region9: #{tpu_custom_call.1} parent=5 // pred_check
        _
      $region10: #{tpu_custom_call.1} parent=5 // pred_check_branch
        %120 = sbr.rel (%p117) target = $region12
      $region11: #{tpu_custom_call.1} parent=5 // pred_region
        %s121 = ssub.s32 %s13, 1
        // Predicated region
        $region13: #{tpu_custom_call.1} parent=11 // pred_check
          %p122 = pneg %p60
        $region14: #{tpu_custom_call.1} parent=11 // pred_check_branch
          %124 = sbr.rel (%p122) target = $region16
        $region15: #{tpu_custom_call.1} parent=11 // pred_region
          %s126 = ssub.s32 256, 256
          %127 = vsyncadd [#allocation3], %s126
          %s128 = sshll.u32 [#allocation2], 4
          %s129 = int_to_ptr.vmem [resolvable:$true] %s128
          %134 = dma.hbm_to_vmem [thread:$0]  %s1, 256, %s129, [#allocation3], 128, 128, 8
        $region16: #{tpu_custom_call.1} parent=11 // pred_fallthru
          _
        // Predicated region
        $region17: #{tpu_custom_call.1} parent=11 // pred_check
          %p135 = pneg %p81
        $region18: #{tpu_custom_call.1} parent=11 // pred_check_branch
          %137 = sbr.rel (%p135) target = $region20
        $region19: #{tpu_custom_call.1} parent=11 // pred_region
          _
        $region20: #{tpu_custom_call.1} parent=11 // pred_fallthru
          _
      $region12: #{tpu_custom_call.1} parent=5 // pred_fallthru
        _
      %p138 = scmp.lt.s32.totalorder %s13, 2
      // Predicated region
      $region21: #{tpu_custom_call.1} parent=5 // pred_check
        %p139 = pneg %p138
      $region22: #{tpu_custom_call.1} parent=5 // pred_check_branch
        %141 = sbr.rel (%p139) target = $region24
      $region23: #{tpu_custom_call.1} parent=5 // pred_region
        // Predicated region
        $region25: #{tpu_custom_call.1} parent=23 // pred_check
          %p142 = pneg %p33
        $region26: #{tpu_custom_call.1} parent=23 // pred_check_branch
          %144 = sbr.rel (%p142) target = $region28
        $region27: #{tpu_custom_call.1} parent=23 // pred_region
          %p145 = scmp.lt.s32.totalorder %s13, 1
          %s146 = scalar_select %p145, %s13, 1
          %s147 = smul.addr %s146, 2
          %s148 = smul.addr %s147, 4
          %s149 = scalar_lea.vmem %s0, %s148
        $region28: #{tpu_custom_call.1} parent=23 // pred_fallthru
          _
      $region24: #{tpu_custom_call.1} parent=5 // pred_fallthru
        _
      %p150 = scmp.le.s32.totalorder 1, %s13
      %p151 = scmp.lt.s32.totalorder %s13, 3
      %p152 = pnand %p150, %p151
      %p153 = pneg %p152
      // Predicated region
      $region29: #{tpu_custom_call.1} parent=5 // pred_check
        _
      $region30: #{tpu_custom_call.1} parent=5 // pred_check_branch
        %155 = sbr.rel (%p152) target = $region32
      $region31: #{tpu_custom_call.1} parent=5 // pred_region
        %s156 = ssub.s32 %s13, 1
        // Predicated region
        $region33: #{tpu_custom_call.1} parent=31 // pred_check
          %p157 = pneg %p60
        $region34: #{tpu_custom_call.1} parent=31 // pred_check_branch
          %159 = sbr.rel (%p157) target = $region36
        $region35: #{tpu_custom_call.1} parent=31 // pred_region
          %160 = dma.done [#allocation3], 256
        $region36: #{tpu_custom_call.1} parent=31 // pred_fallthru
          _
        %p161 = scmp.lt.s32.totalorder %s18, 1
        %s162 = scalar_select %p161, %s18, 1
        %s163 = smul.addr %s162, 2
        %s164 = smul.addr %s163, 4
        %s165 = scalar_lea.vmem %s0, %s164
        %p166 = pneg %p39
        %p167 = pneg %p36
        %p168 = pneg %p60
        %p169 = pneg %p57
        %p170 = pneg %p81
        %p171 = pneg %p78
        %p172 = pneg %p107
        %p173 = pneg %p104
        %s174 = sand.u32 %s94, 1
        %s175 = scalar_lea.sflag [#allocation4], %s174
        %s176 = sand.u32 %s94, 1
        %s177 = smul.addr %s176, 32
        %s178 = scalar_lea.vmem [#allocation5], %s177
        %p179 = scmp.lt.s32.totalorder %s18, 1
        %s180 = scalar_select %p179, %s18, 1
        %s181 = smul.addr %s180, 2
        %s182 = smul.addr %s181, 4
        %s183 = scalar_lea.vmem %s0, %s182
        %v184 = vld [vmem:[%s183] sm:$0xff]
        %v186 = vcombine.high %v184, %v184
        %187 = vrot.lane.b32.xlu0 %v184, 17
        %v188 = vpop.permute.xlu0 %187
        %189 = vrot.lane.b32.xlu0 %v186, 17
        %v190 = vpop.permute.xlu0 %189
        %vm191 = vcmask 138240
        %v192 = vsel %vm191, %v188, %v190
        %v196 = vsel %vm191, 0.0, %v188
        %v197 = vsel %vm191, %v190, 0.0
        %v198 = vlaneseq
        %v199 = vand.u32 %v198, 127
        %v200 = vadd.s32 %v199, 128
        %vm201 = vcmp.lt.s32.totalorder %v199, 0
        %v202 = vsub.s32 0, %v199
        %v203 = vsel %vm201, %v202, %v199
        %v204 = vshrl.u32 %v203, 4
        %v205 = vand.u32 %v203, 15
        %v206 = vsub.s32 0, %v205
        %v207 = vsel %vm201, %v206, %v205
        %vm208 = vcmp.lt.s32.totalorder %v200, 0
        %v209 = vsub.s32 0, %v200
        %v210 = vsel %vm208, %v209, %v200
        %v211 = vshrl.u32 %v210, 4
        %v212 = vand.u32 %v210, 15
        %v213 = vsub.s32 0, %v212
        %v214 = vsel %vm208, %v213, %v212
        %vm215 = vcmp.ne.s32.totalorder %v207, 0
        %vm216 = vcmp.ne.s32.totalorder %v214, 0
        %vm217 = vcmp.lt.s32.totalorder %v207, 0
        %vm218 = vcmp.lt.s32.totalorder %v214, 0
        %vm219 = vmand %vm217, %vm215
        %vm220 = vmand %vm218, %vm216
        %v221 = vadd.s32 %v207, 16
        %v222 = vadd.s32 %v214, 16
        %v223 = vsel %vm219, %v221, %v207
        %v224 = vsel %vm220, %v222, %v214
        %vm225 = vcmp.ne.s32.totalorder %v223, 0
        %vm226 = vcmp.ne.s32.totalorder %v224, 0
        %vm227 = vcmp.ne.s32.totalorder %v223, 15
        %vm228 = vcmp.ne.s32.totalorder %v224, 15
        %v229 = vsel %vm225, 1, 0
        %v230 = vsel %vm226, 1, 0
        %vm231 = vcmp.eq.s32.totalorder %v229, 1
        %vm232 = vcmp.eq.s32.totalorder %v230, 1
        %v233 = vsel %vm231, %v196, 0.0
        %v234 = vsel %vm232, %v192, 0.0
        %v235 = vsel %vm227, 1, 0
        %v236 = vsel %vm228, 1, 0
        %vm237 = vcmp.eq.s32.totalorder %v235, 1
        %vm238 = vcmp.eq.s32.totalorder %v236, 1
        %241 = vrot.lane.b32.xlu0 %v196, 126
        %v242 = vpop.permute.xlu0 %241
        %243 = vrot.lane.b32.xlu0 %v192, 126
        %v244 = vpop.permute.xlu0 %243
        %245 = vrot.lane.b32.xlu0 %v197, 126
        %v246 = vpop.permute.xlu0 %245
        %vm247 = vcmask 1031168
        %v248 = vsel %vm247, %v242, %v244
        %v249 = vsel %vm247, %v244, %v246
        %v252 = vsel %vm237, %v248, 0.0
        %v253 = vsel %vm238, %v249, 0.0
        %254 = vrot.lane.b32.xlu0 %v196, 112
        %v255 = vpop.permute.xlu0 %254
        %256 = vrot.lane.b32.xlu0 %v192, 112
        %v257 = vpop.permute.xlu0 %256
        %258 = vrot.lane.b32.xlu0 %v197, 112
        %v259 = vpop.permute.xlu0 %258
        %vm260 = vcmask 916480
        %v261 = vsel %vm260, %v255, %v257
        %v262 = vsel %vm260, %v257, %v259
        %v265 = vsel %vm231, %v261, 0.0
        %v266 = vsel %vm232, %v262, 0.0
        %267 = vrot.lane.b32.xlu0 %v196, 110
        %v268 = vpop.permute.xlu0 %267
        %269 = vrot.lane.b32.xlu0 %v192, 110
        %v270 = vpop.permute.xlu0 %269
        %271 = vrot.lane.b32.xlu0 %v197, 110
        %v272 = vpop.permute.xlu0 %271
        %vm273 = vcmask 900096
        %v274 = vsel %vm273, %v268, %v270
        %v275 = vsel %vm273, %v270, %v272
        %v278 = vsel %vm237, %v274, 0.0
        %v279 = vsel %vm238, %v275, 0.0
        %280 = vrot.lane.b32.xlu0 %v196, 96
        %v281 = vpop.permute.xlu0 %280
        %282 = vrot.lane.b32.xlu0 %v192, 96
        %v283 = vpop.permute.xlu0 %282
        %284 = vrot.lane.b32.xlu0 %v197, 96
        %v285 = vpop.permute.xlu0 %284
        %vm286 = vcmask 785408
        %v287 = vsel %vm286, %v281, %v283
        %v288 = vsel %vm286, %v283, %v285
        %v291 = vsel %vm231, %v287, 0.0
        %v292 = vsel %vm232, %v288, 0.0
        %293 = vrot.lane.b32.xlu0 %v196, 94
        %v294 = vpop.permute.xlu0 %293
        %295 = vrot.lane.b32.xlu0 %v192, 94
        %v296 = vpop.permute.xlu0 %295
        %297 = vrot.lane.b32.xlu0 %v197, 94
        %v298 = vpop.permute.xlu0 %297
        %vm299 = vcmask 769024
        %v300 = vsel %vm299, %v294, %v296
        %v301 = vsel %vm299, %v296, %v298
        %v304 = vsel %vm237, %v300, 0.0
        %v305 = vsel %vm238, %v301, 0.0
        %v306 = vrot.slane %v196, 4
        %v307 = vrot.slane %v192, 4
        %v308 = vrot.slane %v197, 4
        %309 = vrot.lane.b32.xlu0 %v306, 127
        %v310 = vpop.permute.xlu0 %309
        %311 = vrot.lane.b32.xlu0 %v307, 127
        %v312 = vpop.permute.xlu0 %311
        %313 = vrot.lane.b32.xlu0 %v308, 127
        %v314 = vpop.permute.xlu0 %313
        %vm315 = vcmask 1039360
        %v316 = vsel %vm315, %v310, %v312
        %v317 = vsel %vm315, %v312, %v314
        %v322 = vrot.slane %v265, 4
        %v323 = vrot.slane %v266, 4
        %326 = vrot.lane.b32.xlu0 %v196, 111
        %v327 = vpop.permute.xlu0 %326
        %328 = vrot.lane.b32.xlu0 %v192, 111
        %v329 = vpop.permute.xlu0 %328
        %330 = vrot.lane.b32.xlu0 %v197, 111
        %v331 = vpop.permute.xlu0 %330
        %vm332 = vcmask 908288
        %v333 = vsel %vm332, %v327, %v329
        %v334 = vsel %vm332, %v329, %v331
        %v339 = vrot.slane %v278, 4
        %v340 = vrot.slane %v279, 4
        %343 = vrot.lane.b32.xlu0 %v306, 95
        %v344 = vpop.permute.xlu0 %343
        %345 = vrot.lane.b32.xlu0 %v307, 95
        %v346 = vpop.permute.xlu0 %345
        %347 = vrot.lane.b32.xlu0 %v308, 95
        %v348 = vpop.permute.xlu0 %347
        %vm349 = vcmask 777216
        %v350 = vsel %vm349, %v344, %v346
        %v351 = vsel %vm349, %v346, %v348
        %vm354 = vcmask 1043456
        %v355 = vsel %vm354, %v233, %v316
        %v356 = vsel %vm354, %v234, %v317
        %v357 = vsel %vm354, %v252, %v322
        %v358 = vsel %vm354, %v253, %v323
        %v359 = vsel %vm354, %v333, %v339
        %v360 = vsel %vm354, %v334, %v340
        %v361 = vsel %vm354, %v291, %v350
        %v362 = vsel %vm354, %v292, %v351
        %v363 = vld [vmem:[#allocation2] sm:$0xff]
        %v364 = vld [vmem:[#allocation2 + $0x8] sm:$0xff]
        %v365 = vld [vmem:[%s2] sm:$0xff]
        %v366 = vld [vmem:[%s2 + $0x8] sm:$0xff]
        %368 = vset.pattern.permute.xlu0 0
        %369 = vperm.xlu0 %368, %v365
        %v370 = vpop.permute.xlu0 %369
        %373 = vset.pattern.permute.xlu0 0
        %374 = vperm.xlu0 %373, %v366
        %v375 = vpop.permute.xlu0 %374
        %vm377 = vcmask 293888
        %v379 = vsel %vm377, %v363, 0
        %v382 = vsel %vm377, %v364, 0
        %v385 = vsel %vm354, %v304, 0
        %v388 = vsel %vm354, %v305, 0
        %390 = vmatprep.subr.mxu0 %v356
        %391 = vmatpush1.msra.mxu0 %v355
        %392 = vmatprep.subr.mxu0 %v358
        %393 = vmatpush1.msra.mxu0 %v357
        %394 = vmatprep.subr.mxu0 %v360
        %395 = vmatpush1.msra.mxu0 %v359
        %396 = vmatprep.subr.mxu0 %v362
        %397 = vmatpush1.msra.mxu0 %v361
        %398 = vmatprep.subr.mxu0 %v388
        %399 = vmatpush1.msra.mxu0 %v385
        %400 = vmatprep.subr.mxu0 0.0
        %401 = vmatpush1.msra.mxu0 0.0
        %402 = vmatprep.subr.mxu0 0.0
        %403 = vmatpush1.msra.mxu0 0.0
        %404 = vmatprep.subr.mxu0 0.0
        %405 = vmatpush1.msra.mxu0 0.0
        %406 = vmatprep.subr.mxu0 0.0
        %407 = vmatpush1.msra.mxu0 0.0
        %408 = vmatprep.subr.mxu0 0.0
        %409 = vmatpush1.msra.mxu0 0.0
        %410 = vmatprep.subr.mxu0 0.0
        %411 = vmatpush1.msra.mxu0 0.0
        %412 = vmatprep.subr.mxu0 0.0
        %413 = vmatpush1.msra.mxu0 0.0
        %414 = vmatprep.subr.mxu0 0.0
        %415 = vmatpush1.msra.mxu0 0.0
        %416 = vmatprep.subr.mxu0 0.0
        %417 = vmatpush1.msra.mxu0 0.0
        %418 = vmatprep.subr.mxu0 0.0
        %419 = vmatpush1.msra.mxu0 0.0
        %420 = vmatprep.subr.mxu0 0.0
        %421 = vmatpush1.msra.mxu0 0.0
        %422 = vmatprep.subr.mxu0 0.0
        %423 = vmatpush1.msra.mxu0 0.0
        %424 = vmatprep.subr.mxu0 0.0
        %425 = vmatpush1.msra.mxu0 0.0
        %426 = vmatprep.subr.mxu0 0.0
        %427 = vmatpush1.msra.mxu0 0.0
        %428 = vmatprep.subr.mxu0 0.0
        %429 = vmatpush1.msra.mxu0 0.0
        %430 = vmatprep.subr.mxu0 0.0
        %431 = vmatpush1.msra.mxu0 0.0
        %432 = vmatprep.subr.mxu0 0.0
        %433 = vmatpush1.msra.mxu0 0.0
        %434 = vmatprep.subr.mxu0 0.0
        %435 = vmatpush1.msra.mxu0 0.0
        %436 = vmatprep.subr.mxu0 0.0
        %437 = vmatpush1.msra.mxu0 0.0
        %438 = vmatprep.subr.mxu0 0.0
        %439 = vmatpush1.msra.mxu0 0.0
        %440 = vmatprep.subr.mxu0 0.0
        %441 = vmatpush1.msra.mxu0 0.0
        %442 = vmatprep.subr.mxu0 0.0
        %443 = vmatpush1.msra.mxu0 0.0
        %444 = vmatprep.subr.mxu0 0.0
        %445 = vmatpush1.msra.mxu0 0.0
        %446 = vmatprep.subr.mxu0 0.0
        %447 = vmatpush1.msra.mxu0 0.0
        %448 = vmatprep.subr.mxu0 0.0
        %449 = vmatpush1.msra.mxu0 0.0
        %450 = vmatprep.subr.mxu0 0.0
        %451 = vmatpush1.msra.mxu0 0.0
        %452 = vmatprep.subr.mxu0 0.0
        %453 = vmatpush1.msra.mxu0 0.0
        %454 = vmatprep.mubr.f32.mxu0 0.0
        %455 = vmatmul.mubr.f32.gmra.mrb[0].mxu0 %v379
        %v456 = vpop.f32.mrb[0].mxu0
        %v457 = vadd.f32 %v370, %v456
        %v458 = vpop.f32.mrb[0].mxu0
        %v459 = vadd.f32 %v370, %v458
        %460 = vmatprep.mubr.f32.mxu0 0.0
        %461 = vmatmul.mubr.f32.gmra.mrb[0].mxu0 %v382
        %v462 = vpop.f32.mrb[0].mxu0
        %v463 = vadd.f32 %v375, %v462
        %v464 = vpop.f32.mrb[0].mxu0
        %v465 = vadd.f32 %v375, %v464
        %466 = vdwg.mxu0
        %467 = vst [vmem:[%s178] sm:$0xff] %v457
        %468 = vst [vmem:[%s178 + $0x8] sm:$0xff] %v459
        %469 = vst [vmem:[%s178 + $0x10] sm:$0xff] %v463
        %470 = vst [vmem:[%s178 + $0x18] sm:$0xff] %v465
        %s471 = sand.u32 %s94, 1
        %s472 = scalar_lea.sflag [#allocation4], %s471
        %s473 = sand.u32 %s94, 1
        %s474 = smul.addr %s473, 32
        %s475 = scalar_lea.vmem [#allocation5], %s474
        // Predicated region
        $region37: #{tpu_custom_call.1} parent=31 // pred_check
          %p476 = pneg %p104
        $region38: #{tpu_custom_call.1} parent=31 // pred_check_branch
          %478 = sbr.rel (%p476) target = $region40
        $region39: #{tpu_custom_call.1} parent=31 // pred_region
          %s480 = ssub.s32 512, 512
          %481 = vsyncadd %s472, %s480
          %s482 = smul.addr %s18, 4
          %s483 = smul.addr %s482, 128
          %s484 = scalar_lea.hbm %s3, %s483
          %s485 = sshll.u32 %s475, 4
          %s486 = int_to_ptr.vmem [resolvable:$true] %s485
          %491 = dma.vmem_to_hbm [thread:$0]  %s486, 512, %s484, %s472, 256, 256, 16
        $region40: #{tpu_custom_call.1} parent=31 // pred_fallthru
          _
      $region32: #{tpu_custom_call.1} parent=5 // pred_fallthru
        _
      %p492 = scmp.le.s32.totalorder 2, %s13
      // Predicated region
      $region41: #{tpu_custom_call.1} parent=5 // pred_check
        %p493 = pneg %p492
      $region42: #{tpu_custom_call.1} parent=5 // pred_check_branch
        %495 = sbr.rel (%p493) target = $region44
      $region43: #{tpu_custom_call.1} parent=5 // pred_region
        %s496 = ssub.s32 %s13, 2
        // Predicated region
        $region45: #{tpu_custom_call.1} parent=43 // pred_check
          %p497 = pneg %p110
        $region46: #{tpu_custom_call.1} parent=43 // pred_check_branch
          %499 = sbr.rel (%p497) target = $region48
        $region47: #{tpu_custom_call.1} parent=43 // pred_region
          %s500 = sand.u32 %s95, 1
          %s501 = scalar_lea.sflag [#allocation4], %s500
          %s502 = sand.u32 %s95, 1
          %s503 = smul.addr %s502, 32
          %s504 = scalar_lea.vmem [#allocation5], %s503
          %505 = dma.done %s501, 512
        $region48: #{tpu_custom_call.1} parent=43 // pred_fallthru
          _
      $region44: #{tpu_custom_call.1} parent=5 // pred_fallthru
        _
    $region6: #{tpu_custom_call.1} parent=1 // loop_footer
      %s17 = sadd.s32 1, %s13
    $region7: #{tpu_custom_call.1} parent=1 // loop_footer_branch
      %12 = sbr.rel target = $region3
    $region8: #{tpu_custom_call.1} parent=1 // loop_exit
      _
    %506 = vsyncpa [#allocation3], 1
    %s507 = scalar_lea.sflag [#allocation3], 1
    %508 = vsyncpa %s507, 1
    %509 = vsyncpa [#allocation4], 1
    %s510 = scalar_lea.sflag [#allocation4], 1
    %511 = vsyncpa %s510, 1

</llo_original>
